<compile_context>
chip_gen: v7x
topology: tpu7x:2x2x1
jax: 0.10.0
libtpu: 0.0.40
codegen_flags: <defaults>
</compile_context>

<pallas_src>
import functools

import jax
import jax.numpy as jnp
from jax.experimental import pallas as pl
from jax.experimental.pallas import tpu as pltpu


# ----------------------------- Pallas kernels -----------------------------

def _lat1x1_kernel(x_ref, w_ref, s_ref, b_ref, o_ref):
    # x_ref: (Mt, Cin_p)  w_ref: (Cin_p, Cout_p)  s/b: (1, Cout_p) f32
    y = jnp.dot(x_ref[...], w_ref[...], preferred_element_type=jnp.float32)
    o_ref[...] = (y * s_ref[...] + b_ref[...]).astype(o_ref.dtype)


def _concat_tree(parts):
    """Balanced tree of 2-operand axis-0 concats (proven-lowerable pattern)."""
    while len(parts) > 1:
        nxt = []
        for k in range(0, len(parts) - 1, 2):
            nxt.append(jnp.concatenate([parts[k], parts[k + 1]], axis=0))
        if len(parts) % 2:
            nxt.append(parts[-1])
        parts = nxt
    return parts[0]


def _topdown_kernel(c4_ref, p2_ref, wlat_ref, slat_ref, blat_ref,
                    wc_ref, wl_ref, wr_ref, sconv_ref, bconv_ref,
                    o_ref, spad_ref, *, h, w2, C):
    """Fused TopDown level in the quad-column-packed domain.

    c4_ref: (1, M, 4*Cin)  fine feature, 4 adjacent columns folded into channels
    p2_ref: (1, hp, 2*C)   coarse feature, column pairs folded into channels
    wlat:   (4Cin, 4C)     block-diag lateral 1x1; slat/blat: (1, 4C) f32
    wc:     (3, 4C, 4C)    3x3 center taps over dy; wl/wr: (3, C, C) edge taps
    o_ref:  (1, M, 4C)     output, quad-packed fine layout
    spad:   (M + 4*w2, 4C) zero-padded flat scratch holding s = up(p)+lat(c)
    """
    f32 = jnp.float32
    M = 2 * h * w2                 # fine pixel-quads, row-major over (y, J)
    PAD = 2 * w2                   # zero rows above / below the image
    C4 = 4 * C
    hp = h * w2                    # coarse pixel-pairs

    # ---- lateral 1x1 conv + BN over all fine pixels: one 128-wide matmul ----
    lat = jnp.dot(c4_ref[0], wlat_ref[...], preferred_element_type=f32)
    lat = lat * slat_ref[...] + blat_ref[...]                       # (M, 4C) f32

    # ---- bilinear x2 upsample of p (PyTorch align_corners=False) ----
    x = p2_ref[0].astype(f32)                                       # (hp, 2C)
    x_up = jnp.concatenate([x[:w2], x[:-w2]], axis=0)               # coarse row i-1 (clamped)
    x_dn = jnp.concatenate([x[w2:], x[-w2:]], axis=0)               # coarse row i+1 (clamped)
    e_rows = 0.75 * x + 0.25 * x_up                                 # fine rows y = 2i
    o_rows = 0.75 * x + 0.25 * x_dn                                 # fine rows y = 2i+1

    j_pow2 = (w2 & (w2 - 1)) == 0
    Jcol = jax.lax.broadcasted_iota(jnp.int32, (hp, 1), 0)
    Jcol = (Jcol & (w2 - 1)) if j_pow2 else (Jcol % w2)
    is_j0 = Jcol == 0
    is_jl = Jcol == (w2 - 1)

    def quad_cols(r):
        # (hp, 2C) -> (hp, 4C): fine cols [4J, 4J+1, 4J+2, 4J+3] in channels
        r_e, r_o = r[:, :C], r[:, C:]
        r_m = jnp.where(is_j0, r_e,
                        jnp.concatenate([r_o[:1], r_o[:-1]], axis=0))   # coarse col 2J-1 (clamped)
        r_p = jnp.where(is_jl, r_o,
                        jnp.concatenate([r_e[1:], r_e[-1:]], axis=0))   # coarse col 2J+2 (clamped)
        return jnp.concatenate([0.75 * r_e + 0.25 * r_m,
                                0.75 * r_e + 0.25 * r_o,
                                0.25 * r_e + 0.75 * r_o,
                                0.75 * r_o + 0.25 * r_p], axis=-1)

    up_e = quad_cols(e_rows)                                        # fine rows 2i
    up_o = quad_cols(o_rows)                                        # fine rows 2i+1

    # ---- single fused store of s = upsample(p) + lat(c) (no per-row RMW) ----
    pieces = []
    for i in range(h):
        pieces.append(up_e[i * w2:(i + 1) * w2])
        pieces.append(up_o[i * w2:(i + 1) * w2])
    s = _concat_tree(pieces) + lat                                  # (M, 4C) f32
    spad_ref[PAD:PAD + M, :] = s.astype(spad_ref.dtype)
    # Unconditional halo zeroing: scratch is per-core under "parallel" batch
    # sharding, so a pl.program_id(0)==0 gate would be unsafe on megacore.
    zpad = jnp.zeros((PAD, C4), spad_ref.dtype)
    spad_ref[0:PAD, :] = zpad
    spad_ref[PAD + M:PAD + M + PAD, :] = zpad

    # ---- 3x3 conv + BN + ReLU: 3 dense taps + 6 slim edge taps ----
    row_idx = jax.lax.broadcasted_iota(jnp.int32, (M, 1), 0)
    colq = (row_idx & (w2 - 1)) if j_pow2 else (row_idx % w2)
    mask_l = (colq != 0).astype(f32)                                # fine col 4J-1 exists
    mask_r = (colq != (w2 - 1)).astype(f32)                         # fine col 4J+4 exists

    acc = jnp.zeros((M, C4), f32)
    acc_l = jnp.zeros((M, C), f32)
    acc_r = jnp.zeros((M, C), f32)
    for t in range(3):                                              # dy = t - 1
        base = PAD + (t - 1) * w2
        acc = acc + jnp.dot(spad_ref[base:base + M, :], wc_ref[t],
                            preferred_element_type=f32)
        xl = spad_ref[base - 1:base - 1 + M, :]                     # quad J-1
        xr = spad_ref[base + 1:base + 1 + M, :]                     # quad J+1
        acc_l = acc_l + jnp.dot(xl[:, 3 * C:], wl_ref[t],
                                preferred_element_type=f32)
        acc_r = acc_r + jnp.dot(xr[:, :C], wr_ref[t],
                                preferred_element_type=f32)
    edge = jnp.concatenate(
        [acc_l * mask_l, jnp.zeros((M, 2 * C), f32), acc_r * mask_r], axis=-1)

    y = (acc + edge) * sconv_ref[...] + bconv_ref[...]
    o_ref[0] = jnp.maximum(y, 0.0).astype(o_ref.dtype)


# ------------------------------- wrappers ----------------------------------

def lateral_1x1(x, w, scale, bias, act_dtype):
    """Coarsest-level 1x1 conv + folded BN, column-packed and tiled over rows."""
    N, H, W, Cin = x.shape
    Cout = w.shape[-1]
    pack = 4 if W % 4 == 0 else (2 if W % 2 == 0 else 1)
    M = N * H * W // pack
    xq = x.astype(act_dtype).reshape(M, pack * Cin)                 # free reshape
    wq = jnp.kron(jnp.eye(pack, dtype=w.dtype), w)                  # block-diag
    sq = jnp.tile(scale.astype(jnp.float32), pack).reshape(1, pack * Cout)
    bq = jnp.tile(bias.astype(jnp.float32), pack).reshape(1, pack * Cout)

    Mt = M if M <= 1024 else 1024
    out = pl.pallas_call(
        _lat1x1_kernel,
        out_shape=jax.ShapeDtypeStruct((M, pack * Cout), act_dtype),
        grid=(pl.cdiv(M, Mt),),
        in_specs=[
            pl.BlockSpec((Mt, pack * Cin), lambda i: (i, 0)),
            pl.BlockSpec((pack * Cin, pack * Cout), lambda i: (0, 0)),
            pl.BlockSpec((1, pack * Cout), lambda i: (0, 0)),
            pl.BlockSpec((1, pack * Cout), lambda i: (0, 0)),
        ],
        out_specs=pl.BlockSpec((Mt, pack * Cout), lambda i: (i, 0)),
        compiler_params=pltpu.CompilerParams(dimension_semantics=("parallel",)),
    )(xq, wq, sq, bq)
    return out.reshape(N, H, W, Cout)


def fused_topdown(c, p, td, act_dtype):
    """TopDown(c, p): conv3x3(upsample2x(p) + conv1x1(c)) as one pallas_call."""
    N, H, W, Cin = c.shape
    Np, h, w, C = p.shape
    assert Np == N and H == 2 * h and W == 2 * w
    assert W % 4 == 0 and w % 2 == 0, "quad-parity packing needs W % 4 == 0"
    w2 = w // 2
    M = H * W // 4
    hp = h * w2
    C4 = 4 * C
    c4 = c.astype(act_dtype).reshape(N, M, 4 * Cin)                 # free reshape
    p2 = p.astype(act_dtype).reshape(N, hp, 2 * C)                  # free reshape

    kern = functools.partial(_topdown_kernel, h=h, w2=w2, C=C)
    out = pl.pallas_call(
        kern,
        out_shape=jax.ShapeDtypeStruct((N, M, C4), act_dtype),
        grid=(N,),
        in_specs=[
            pl.BlockSpec((1, M, 4 * Cin), lambda n: (n, 0, 0)),
            pl.BlockSpec((1, hp, 2 * C), lambda n: (n, 0, 0)),
            pl.BlockSpec((4 * Cin, C4), lambda n: (0, 0)),
            pl.BlockSpec((1, C4), lambda n: (0, 0)),
            pl.BlockSpec((1, C4), lambda n: (0, 0)),
            pl.BlockSpec((3, C4, C4), lambda n: (0, 0, 0)),
            pl.BlockSpec((3, C, C), lambda n: (0, 0, 0)),
            pl.BlockSpec((3, C, C), lambda n: (0, 0, 0)),
            pl.BlockSpec((1, C4), lambda n: (0, 0)),
            pl.BlockSpec((1, C4), lambda n: (0, 0)),
        ],
        out_specs=pl.BlockSpec((1, M, C4), lambda n: (n, 0, 0)),
        scratch_shapes=[pltpu.VMEM((M + 4 * w2, C4), act_dtype)],
        compiler_params=pltpu.CompilerParams(dimension_semantics=("parallel",)),
    )(c4, p2,
      td["lat"]["w"], td["lat"]["scale"], td["lat"]["bias"],
      td["conv"]["w_center"], td["conv"]["w_left"], td["conv"]["w_right"],
      td["conv"]["scale"], td["conv"]["bias"])
    # (N, M, 4C) -> (N, H, W, C) is a pure row-major regrouping (free).
    return out.reshape(N, H, W, C)


# --------------------------- parameters & packing ---------------------------

def make_conv_bn_params(key, cin, cout, ksize):
    k1, k2, k3, k4, k5 = jax.random.split(key, 5)
    w = jax.random.normal(k1, (ksize, ksize, cin, cout), jnp.float32) * (0.1 / (ksize * ksize))
    gamma = 1.0 + 0.1 * jax.random.normal(k2, (cout,), jnp.float32)
    beta = 0.1 * jax.random.normal(k3, (cout,), jnp.float32)
    mean = 0.1 * jax.random.normal(k4, (cout,), jnp.float32)
    var = jnp.abs(jax.random.normal(k5, (cout,), jnp.float32)) + 0.5
    eps = 1e-5
    scale = gamma / jnp.sqrt(var + eps)        # fold eval-mode BN
    bias = beta - mean * scale
    return {"w": w, "scale": scale, "bias": bias}


def init_fpn_params(key, in_channels_list, f_channels):
    keys = jax.random.split(key, 1 + 2 * (len(in_channels_list) - 1))
    params = {
        "lat": make_conv_bn_params(keys[0], in_channels_list[-1], f_channels, 1),
        "topdowns": [],
    }
    i = 1
    for c in in_channels_list[:-1]:
        td = {
            "lat": make_conv_bn_params(keys[i], c, f_channels, 1),
            "conv": make_conv_bn_params(keys[i + 1], f_channels, f_channels, 3),
        }
        params["topdowns"].append(td)
        i += 2
    return params


def _pack_lat_quad(p, pack, act_dtype):
    """(1,1,Cin,C) 1x1 weight -> block-diagonal (pack*Cin, pack*C)."""
    cin, cout = p["w"].shape[2], p["w"].shape[3]
    w = p["w"].reshape(cin, cout)
    wq = jnp.kron(jnp.eye(pack, dtype=w.dtype), w)
    return {"w": wq.astype(act_dtype),
            "scale": jnp.tile(p["scale"].astype(jnp.float32), pack).reshape(1, pack * cout),
            "bias": jnp.tile(p["bias"].astype(jnp.float32), pack).reshape(1, pack * cout)}


def _pack_conv3x3_quad(p, act_dtype):
    """(3,3,C,C) HWIO -> quad-packed taps.

    Center taps (3, 4C, 4C): for output sub-column q_out and dx with
    0 <= q_out+dx <= 3 (same quad), block (q_in=q_out+dx, q_out) = w[ky, dx+1].
    Slim edge taps (3, C, C): dj=-1 (q_in=3 of quad J-1 -> q_out=0, dx=-1) and
    dj=+1 (q_in=0 of quad J+1 -> q_out=3, dx=+1).
    """
    w = p["w"]
    C = w.shape[-1]
    center = []
    for ky in range(3):
        blk = jnp.zeros((4 * C, 4 * C), w.dtype)
        for q_out in range(4):
            for dx in (-1, 0, 1):
                q_in = q_out + dx
                if 0 <= q_in <= 3:
                    blk = blk.at[q_in * C:(q_in + 1) * C,
                                 q_out * C:(q_out + 1) * C].set(w[ky, dx + 1])
        center.append(blk)
    return {"w_center": jnp.stack(center, axis=0).astype(act_dtype),
            "w_left": w[:, 0].astype(act_dtype),
            "w_right": w[:, 2].astype(act_dtype),
            "scale": jnp.tile(p["scale"].astype(jnp.float32), 4).reshape(1, 4 * C),
            "bias": jnp.tile(p["bias"].astype(jnp.float32), 4).reshape(1, 4 * C)}


def pack_fpn_params(params, act_dtype=jnp.float32):
    lat = params["lat"]
    cin, cout = lat["w"].shape[2], lat["w"].shape[3]
    return {
        "lat": {"w": lat["w"].reshape(cin, cout).astype(act_dtype),
                "scale": lat["scale"].astype(jnp.float32),
                "bias": lat["bias"].astype(jnp.float32)},
        "topdowns": [{"lat": _pack_lat_quad(td["lat"], 4, act_dtype),
                      "conv": _pack_conv3x3_quad(td["conv"], act_dtype)}
                     for td in params["topdowns"]],
    }


def fpn_forward(packed, cs, act_dtype=jnp.float32):
    """FPN.forward(*cs): coarsest feature map last, returns (p_fine, ..., p_coarse)."""
    lat0 = packed["lat"]
    p = lateral_1x1(cs[-1], lat0["w"], lat0["scale"], lat0["bias"], act_dtype)
    ps = (p,)
    for c, td in zip(reversed(cs[:-1]), reversed(packed["topdowns"])):
        p = fused_topdown(c, ps[0], td, act_dtype)
        ps = (p,) + ps
    return ps


# ------------------------------ JAX reference ------------------------------

def _ref_conv_bn(x, w, scale, bias, relu):
    y = jax.lax.conv_general_dilated(
        x, w, window_strides=(1, 1), padding="SAME",
        dimension_numbers=("NHWC", "HWIO", "NHWC"))
    y = y * scale + bias
    return jnp.maximum(y, 0.0) if relu else y


def _ref_upsample2x(p):
    N, h, w, C = p.shape

    def coords(out_size, in_size):
        o = jnp.arange(out_size, dtype=jnp.float32)
        coord = jnp.maximum((o + 0.5) / 2.0 - 0.5, 0.0)      # PyTorch align_corners=False
        lo = jnp.floor(coord).astype(jnp.int32)
        hi = jnp.minimum(lo + 1, in_size - 1)
        frac = coord - lo.astype(jnp.float32)
        return lo, hi, frac

    ylo, yhi, yf = coords(2 * h, h)
    xlo, xhi, xf = coords(2 * w, w)
    xfb = xf[None, None, :, None]
    top = p[:, ylo][:, :, xlo] * (1 - xfb) + p[:, ylo][:, :, xhi] * xfb
    bot = p[:, yhi][:, :, xlo] * (1 - xfb) + p[:, yhi][:, :, xhi] * xfb
    yfb = yf[None, :, None, None]
    return top * (1 - yfb) + bot * yfb


def ref_fpn_forward(params, cs):
    last = params["lat"]
    p = _ref_conv_bn(cs[-1], last["w"], last["scale"], last["bias"], relu=False)
    ps = (p,)
    for c, td in zip(reversed(cs[:-1]), reversed(params["topdowns"])):
        lat = _ref_conv_bn(c, td["lat"]["w"], td["lat"]["scale"], td["lat"]["bias"], relu=False)
        s = _ref_upsample2x(ps[0]) + lat
        p = _ref_conv_bn(s, td["conv"]["w"], td["conv"]["scale"], td["conv"]["bias"], relu=True)
        ps = (p,) + ps
    return ps


# ----------------------------------- main -----------------------------------

if __name__ == "__main__":
    key = jax.random.PRNGKey(0)
    in_channels_list = (4, 8, 16)
    f_channels = 32
    N = 2

    k_par, k1, k2, k3 = jax.random.split(key, 4)
    params = init_fpn_params(k_par, in_channels_list, f_channels)

    # NHWC inputs (finest first, coarsest last), pyramid strides of 2
    c1 = jax.random.normal(k1, (N, 16, 16, in_channels_list[0]), jnp.float32)
    c2 = jax.random.normal(k2, (N, 8, 8, in_channels_list[1]), jnp.float32)
    c3 = jax.random.normal(k3, (N, 4, 4, in_channels_list[2]), jnp.float32)
    cs = (c1, c2, c3)

    ps_ref = ref_fpn_forward(params, cs)

    # f32 path: tight validation against the pure-JAX reference.
    packed_f32 = pack_fpn_params(params, act_dtype=jnp.float32)
    ps = jax.block_until_ready(fpn_forward(packed_f32, cs, act_dtype=jnp.float32))
    for a, b in zip(ps, ps_ref):
        assert a.shape == b.shape, (a.shape, b.shape)
        err = float(jnp.max(jnp.abs(a.astype(jnp.float32) - b)))
        assert err < 1e-3, err

    # bf16 path (halved HBM/VMEM traffic, bf16 MXU): loose sanity check.
    packed_bf16 = pack_fpn_params(params, act_dtype=jnp.bfloat16)
    ps16 = jax.block_until_ready(fpn_forward(packed_bf16, cs, act_dtype=jnp.bfloat16))
    for a, b in zip(ps16, ps_ref):
        assert a.shape == b.shape, (a.shape, b.shape)
        err = float(jnp.max(jnp.abs(a.astype(jnp.float32) - b)))
        ref_mag = float(jnp.max(jnp.abs(b)))
        assert err < 0.05 * ref_mag + 0.05, (err, ref_mag)

    print("KERNEL_OK")
</pallas_src>

<mosaic_0001>
module attributes {stable_mosaic.version = 11 : i64} {
  func.func @_lat1x1_kernel(%arg0: i32, %arg1: memref<8x64xf32, #tpu.memory_space<vmem>>, %arg2: memref<64x128xf32, #tpu.memory_space<vmem>>, %arg3: memref<1x128xf32, #tpu.memory_space<vmem>>, %arg4: memref<1x128xf32, #tpu.memory_space<vmem>>, %arg5: memref<8x128xf32, #tpu.memory_space<vmem>>) attributes {dimension_semantics = [#tpu.dimension_semantics<parallel>], iteration_bounds = array<i64: 1>, scalar_prefetch = 0 : i64, scratch_operands = 0 : i64, tpu.core_type = #tpu.core_type<tc>, window_params = [{transform_indices = @transform_0, window_bounds = array<i64: 8, 64>}, {pipeline_mode = #tpu.pipeline_mode<synchronous>, transform_indices = @transform_1, window_bounds = array<i64: 64, 128>}, {pipeline_mode = #tpu.pipeline_mode<synchronous>, transform_indices = @transform_2, window_bounds = array<i64: 1, 128>}, {pipeline_mode = #tpu.pipeline_mode<synchronous>, transform_indices = @transform_3, window_bounds = array<i64: 1, 128>}, {transform_indices = @transform_4, window_bounds = array<i64: 8, 128>}]} {
    %c0 = arith.constant 0 : index
    %c0_0 = arith.constant 0 : index
    %0 = vector.load %arg1[%c0, %c0_0] : memref<8x64xf32, #tpu.memory_space<vmem>>, vector<8x64xf32>
    %c0_1 = arith.constant 0 : index
    %c0_2 = arith.constant 0 : index
    %1 = vector.load %arg2[%c0_1, %c0_2] : memref<64x128xf32, #tpu.memory_space<vmem>>, vector<64x128xf32>
    %cst = arith.constant dense<0.000000e+00> : vector<8x128xf32>
    %2 = tpu.matmul %0, %1, %cst {dimension_numbers = #tpu.dot_dimension_numbers<[1], [0], [0], [1], [0, 0, 1, 1], [], []>} : vector<8x64xf32>, vector<64x128xf32>, vector<8x128xf32> -> vector<8x128xf32>
    %c0_3 = arith.constant 0 : index
    %c0_4 = arith.constant 0 : index
    %3 = vector.load %arg3[%c0_3, %c0_4] : memref<1x128xf32, #tpu.memory_space<vmem>>, vector<1x128xf32>
    %4 = vector.broadcast %3 : vector<1x128xf32> to vector<8x128xf32>
    %5 = arith.mulf %2, %4 : vector<8x128xf32>
    %c0_5 = arith.constant 0 : index
    %c0_6 = arith.constant 0 : index
    %6 = vector.load %arg4[%c0_5, %c0_6] : memref<1x128xf32, #tpu.memory_space<vmem>>, vector<1x128xf32>
    %7 = vector.broadcast %6 : vector<1x128xf32> to vector<8x128xf32>
    %8 = arith.addf %5, %7 : vector<8x128xf32>
    %c0_7 = arith.constant 0 : index
    %c0_8 = arith.constant 0 : index
    %9 = vector.load %arg5[%c0_7, %c0_8] : memref<8x128xf32, #tpu.memory_space<vmem>>, vector<8x128xf32>
    tpu.vector_store %arg5[%c0_7, %c0_8], %8 {strides = array<i32>} : memref<8x128xf32, #tpu.memory_space<vmem>>, vector<8x128xf32>,
    return
  }
  func.func @transform_0(%arg0: i32) -> (i32, i32) {
    %c0_i32 = arith.constant 0 : i32
    %c0_i32_0 = arith.constant 0 : i32
    return %arg0, %c0_i32 : i32, i32
  }
  func.func @transform_1(%arg0: i32) -> (i32, i32) {
    %c0_i32 = arith.constant 0 : i32
    %c0_i32_0 = arith.constant 0 : i32
    %c0_i32_1 = arith.constant 0 : i32
    return %c0_i32, %c0_i32_0 : i32, i32
  }
  func.func @transform_2(%arg0: i32) -> (i32, i32) {
    %c0_i32 = arith.constant 0 : i32
    %c0_i32_0 = arith.constant 0 : i32
    %c0_i32_1 = arith.constant 0 : i32
    return %c0_i32, %c0_i32_0 : i32, i32
  }
  func.func @transform_3(%arg0: i32) -> (i32, i32) {
    %c0_i32 = arith.constant 0 : i32
    %c0_i32_0 = arith.constant 0 : i32
    %c0_i32_1 = arith.constant 0 : i32
    return %c0_i32, %c0_i32_0 : i32, i32
  }
  func.func @transform_4(%arg0: i32) -> (i32, i32) {
    %c0_i32 = arith.constant 0 : i32
    %c0_i32_0 = arith.constant 0 : i32
    return %arg0, %c0_i32 : i32, i32
  }
}

</mosaic_0001>

<llo_original>
// kernel: tpu_custom_call.1
$region0: #{tpu_custom_call.1}
  #allocation0 [shape = 'u32[]', space=smem, size = 0x4, offset = 0x4, fixed_abs, tag = 'smem constant byte address 0x4 - core index']
  #allocation1 [shape = 'u32[144,128]{1,0:T(1,128)}', space=vmem, size = 0x12000, scoped, tag = 'internal scratch']
  %s0 = inlined_call_operand.hbm [shape: f32[8,64], index: 0, kind: input, shape index: {}]
  %s1 = inlined_call_operand.hbm [shape: f32[64,128], index: 1, kind: input, shape index: {}]
  %s2 = inlined_call_operand.vmem [shape: f32[1,128], index: 2, kind: input, shape index: {}]
  %s3 = inlined_call_operand.vmem [shape: f32[1,128], index: 3, kind: input, shape index: {}]
  %s4 = inlined_call_operand.hbm [shape: f32[8,128], index: 4, kind: output, shape index: {}]
  %s5 = sld [smem:[#allocation0]]
  $region34: #{tpu_custom_call.1} parent=0
    _
  %s7 = ssub.s32 1, %s5
  %s8 = scalar_select 0, %s7, %s5
  $region1: #{tpu_custom_call.1} parent=0
    #allocation2 [shape = 'u8[4096]{0}', space=vmem, size = 0x1000, scoped, tag = 'input window, operand 0, single buffered']
    #allocation3 [shape = 's32[1]{0}', space=sflag, size = 0x4, scoped, tag = 'scoped memory for tpu_custom_call.1']
    #allocation4 [shape = 's32[1]{0}', space=sflag, size = 0x4, scoped, tag = 'scoped memory for tpu_custom_call.1']
    #allocation5 [shape = 'u8[32768]{0}', space=vmem, size = 0x8000, scoped, tag = 'input window, operand 1, single buffered']
    #allocation6 [shape = 's32[1]{0}', space=sflag, size = 0x4, scoped, tag = 'scoped memory for tpu_custom_call.1']
    #allocation7 [shape = 'u8[4096]{0}', space=vmem, size = 0x1000, scoped, tag = 'output window, operand 0, single buffered']
    %9 = vsyncpa [#allocation3], 0
    %10 = vsyncpa [#allocation6], 0
    %11 = vsyncpa [#allocation4], 0
    // Predicated region
    $region2: #{tpu_custom_call.1} parent=1 // pred_check
      _
    $region3: #{tpu_custom_call.1} parent=1 // pred_check_branch
      %13 = sbr.rel (0) target = $region5
    $region4: #{tpu_custom_call.1} parent=1 // pred_region
      %s15 = ssub.s32 128, 128
      %16 = vsyncadd [#allocation3], %s15
      %s18 = sshll.u32 [#allocation2], 4
      %s19 = int_to_ptr.vmem [resolvable:$true] %s18
      %21 = dma.hbm_to_vmem [thread:$0]  %s0, 128, %s19, [#allocation3]
    $region5: #{tpu_custom_call.1} parent=1 // pred_fallthru
      _
    // Predicated region
    $region6: #{tpu_custom_call.1} parent=1 // pred_check
      _
    $region7: #{tpu_custom_call.1} parent=1 // pred_check_branch
      %23 = sbr.rel (0) target = $region9
    $region8: #{tpu_custom_call.1} parent=1 // pred_region
      %s25 = ssub.s32 1024, 1024
      %26 = vsyncadd [#allocation6], %s25
      %s27 = sshll.u32 [#allocation5], 4
      %s28 = int_to_ptr.vmem [resolvable:$true] %s27
      %33 = dma.hbm_to_vmem [thread:$0]  %s1, 1024, %s28, [#allocation6], 128, 128, 8
    $region9: #{tpu_custom_call.1} parent=1 // pred_fallthru
      _
    // Predicated region
    $region10: #{tpu_custom_call.1} parent=1 // pred_check
      _
    $region11: #{tpu_custom_call.1} parent=1 // pred_check_branch
      %35 = sbr.rel (0) target = $region13
    $region12: #{tpu_custom_call.1} parent=1 // pred_region
      _
    $region13: #{tpu_custom_call.1} parent=1 // pred_fallthru
      _
    // Predicated region
    $region14: #{tpu_custom_call.1} parent=1 // pred_check
      _
    $region15: #{tpu_custom_call.1} parent=1 // pred_check_branch
      %37 = sbr.rel (0) target = $region17
    $region16: #{tpu_custom_call.1} parent=1 // pred_region
      _
    $region17: #{tpu_custom_call.1} parent=1 // pred_fallthru
      _
    // Predicated region
    $region18: #{tpu_custom_call.1} parent=1 // pred_check
      _
    $region19: #{tpu_custom_call.1} parent=1 // pred_check_branch
      %39 = sbr.rel (0) target = $region21
    $region20: #{tpu_custom_call.1} parent=1 // pred_region
      %40 = dma.done [#allocation3], 128
    $region21: #{tpu_custom_call.1} parent=1 // pred_fallthru
      _
    // Predicated region
    $region22: #{tpu_custom_call.1} parent=1 // pred_check
      _
    $region23: #{tpu_custom_call.1} parent=1 // pred_check_branch
      %42 = sbr.rel (0) target = $region25
    $region24: #{tpu_custom_call.1} parent=1 // pred_region
      %43 = dma.done [#allocation6], 1024
    $region25: #{tpu_custom_call.1} parent=1 // pred_fallthru
      _
    %v44 = vld [vmem:[#allocation2] sm:$0xff]
    %v45 = vld [vmem:[#allocation5] sm:$0xff]
    %v46 = vld [vmem:[#allocation5 + $0x8] sm:$0xff]
    %v47 = vld [vmem:[#allocation5 + $0x10] sm:$0xff]
    %v48 = vld [vmem:[#allocation5 + $0x18] sm:$0xff]
    %v49 = vld [vmem:[#allocation5 + $0x20] sm:$0xff]
    %v50 = vld [vmem:[#allocation5 + $0x28] sm:$0xff]
    %v51 = vld [vmem:[#allocation5 + $0x30] sm:$0xff]
    %v52 = vld [vmem:[#allocation5 + $0x38] sm:$0xff]
    %vm53 = vcmask 523264
    %v55 = vsel %vm53, %v44, 0
    %57 = vmatprep.subr.mxu0 0.0
    %58 = vmatpush1.msra.mxu0 %v45
    %59 = vmatprep.subr.mxu0 0.0
    %60 = vmatpush1.msra.mxu0 %v46
    %61 = vmatprep.subr.mxu0 0.0
    %62 = vmatpush1.msra.mxu0 %v47
    %63 = vmatprep.subr.mxu0 0.0
    %64 = vmatpush1.msra.mxu0 %v48
    %65 = vmatprep.subr.mxu0 0.0
    %66 = vmatpush1.msra.mxu0 %v49
    %67 = vmatprep.subr.mxu0 0.0
    %68 = vmatpush1.msra.mxu0 %v50
    %69 = vmatprep.subr.mxu0 0.0
    %70 = vmatpush1.msra.mxu0 %v51
    %71 = vmatprep.subr.mxu0 0.0
    %72 = vmatpush1.msra.mxu0 %v52
    %73 = vmatprep.subr.mxu0 0.0
    %74 = vmatpush1.msra.mxu0 0.0
    %75 = vmatprep.subr.mxu0 0.0
    %76 = vmatpush1.msra.mxu0 0.0
    %77 = vmatprep.subr.mxu0 0.0
    %78 = vmatpush1.msra.mxu0 0.0
    %79 = vmatprep.subr.mxu0 0.0
    %80 = vmatpush1.msra.mxu0 0.0
    %81 = vmatprep.subr.mxu0 0.0
    %82 = vmatpush1.msra.mxu0 0.0
    %83 = vmatprep.subr.mxu0 0.0
    %84 = vmatpush1.msra.mxu0 0.0
    %85 = vmatprep.subr.mxu0 0.0
    %86 = vmatpush1.msra.mxu0 0.0
    %87 = vmatprep.subr.mxu0 0.0
    %88 = vmatpush1.msra.mxu0 0.0
    %89 = vmatprep.subr.mxu0 0.0
    %90 = vmatpush1.msra.mxu0 0.0
    %91 = vmatprep.subr.mxu0 0.0
    %92 = vmatpush1.msra.mxu0 0.0
    %93 = vmatprep.subr.mxu0 0.0
    %94 = vmatpush1.msra.mxu0 0.0
    %95 = vmatprep.subr.mxu0 0.0
    %96 = vmatpush1.msra.mxu0 0.0
    %97 = vmatprep.subr.mxu0 0.0
    %98 = vmatpush1.msra.mxu0 0.0
    %99 = vmatprep.subr.mxu0 0.0
    %100 = vmatpush1.msra.mxu0 0.0
    %101 = vmatprep.subr.mxu0 0.0
    %102 = vmatpush1.msra.mxu0 0.0
    %103 = vmatprep.subr.mxu0 0.0
    %104 = vmatpush1.msra.mxu0 0.0
    %105 = vmatprep.subr.mxu0 0.0
    %106 = vmatpush1.msra.mxu0 0.0
    %107 = vmatprep.subr.mxu0 0.0
    %108 = vmatpush1.msra.mxu0 0.0
    %109 = vmatprep.subr.mxu0 0.0
    %110 = vmatpush1.msra.mxu0 0.0
    %111 = vmatprep.subr.mxu0 0.0
    %112 = vmatpush1.msra.mxu0 0.0
    %113 = vmatprep.subr.mxu0 0.0
    %114 = vmatpush1.msra.mxu0 0.0
    %115 = vmatprep.subr.mxu0 0.0
    %116 = vmatpush1.msra.mxu0 0.0
    %117 = vmatprep.subr.mxu0 0.0
    %118 = vmatpush1.msra.mxu0 0.0
    %119 = vmatprep.subr.mxu0 0.0
    %120 = vmatpush1.msra.mxu0 0.0
    %121 = vmatprep.mubr.f32.mxu0 0.0
    %122 = vmatmul.mubr.f32.gmra.mrb[0].mxu0 %v55
    %v123 = vpop.f32.mrb[0].mxu0
    %v124 = vadd.f32 0.0, %v123
    %v125 = vpop.f32.mrb[0].mxu0
    %126 = vdwg.mxu0
    %v127 = vld [vmem:[%s2] sm:$0x1]
    %v129 = vlaneseq
    %v130 = vshrl.u32 %v129, 7
    %v131 = vsub.s32 0, %v130
    %v132 = vrot.slane %v127, %v131
    %v134 = vmul.f32 %v124, %v132
    %v135 = vld [vmem:[%s3] sm:$0x1]
    %v137 = vlaneseq
    %v138 = vshrl.u32 %v137, 7
    %v139 = vsub.s32 0, %v138
    %v140 = vrot.slane %v135, %v139
    %v142 = vadd.f32 %v134, %v140
    %143 = vst [vmem:[#allocation7] sm:$0xff] %v142
    // Predicated region
    $region26: #{tpu_custom_call.1} parent=1 // pred_check
      _
    $region27: #{tpu_custom_call.1} parent=1 // pred_check_branch
      %145 = sbr.rel (0) target = $region29
    $region28: #{tpu_custom_call.1} parent=1 // pred_region
      %s147 = ssub.s32 128, 128
      %148 = vsyncadd [#allocation4], %s147
      %s150 = sshll.u32 [#allocation7], 4
      %s151 = int_to_ptr.vmem [resolvable:$true] %s150
      %153 = dma.vmem_to_hbm [thread:$0]  %s151, 128, %s4, [#allocation4]
    $region29: #{tpu_custom_call.1} parent=1 // pred_fallthru
      _
    // Predicated region
    $region30: #{tpu_custom_call.1} parent=1 // pred_check
      _
    $region31: #{tpu_custom_call.1} parent=1 // pred_check_branch
      %155 = sbr.rel (0) target = $region33
    $region32: #{tpu_custom_call.1} parent=1 // pred_region
      %156 = dma.done [#allocation4], 128
    $region33: #{tpu_custom_call.1} parent=1 // pred_fallthru
      _
    %157 = vsyncpa [#allocation3], 1
    %158 = vsyncpa [#allocation6], 1
    %159 = vsyncpa [#allocation4], 1

</llo_original>
